<compile_context>
chip_gen: v7x
topology: tpu7x:2x2x1
jax: 0.10.0
libtpu: 0.0.40
codegen_flags: <defaults>
</compile_context>

<pallas_src>
import jax
import jax.numpy as jnp
from jax.experimental import pallas as pl
from jax.experimental.pallas import tpu as pltpu


def mlp_kernel(x_ref,
               w1_ref, b1_ref,
               w2_ref, b2_ref,
               w3_ref, b3_ref,
               w4_ref, b4_ref,
               o_ref):
    # Whole 4-layer MLP for one batch tile, all operands VMEM-resident.
    # bf16 casts happen in-kernel (VALU has huge slack); fp32 accumulation.
    bf = jnp.bfloat16
    x = x_ref[...].astype(bf)
    h = jnp.dot(x, w1_ref[...].astype(bf), preferred_element_type=jnp.float32) + b1_ref[...]
    h = jnp.maximum(h, 0.0).astype(bf)                                   # ReLU
    h = jnp.dot(h, w2_ref[...].astype(bf), preferred_element_type=jnp.float32) + b2_ref[...]
    h = jnp.maximum(h, 0.0).astype(bf)                                   # ReLU
    h = jnp.dot(h, w3_ref[...].astype(bf), preferred_element_type=jnp.float32) + b3_ref[...]
    h = jnp.maximum(h, 0.0).astype(bf)                                   # ReLU
    h = jnp.dot(h, w4_ref[...].astype(bf), preferred_element_type=jnp.float32) + b4_ref[...]
    o_ref[...] = h.astype(o_ref.dtype)


def _round_up(a, m):
    return (a + m - 1) // m * m


def _choose_batch_tile(batch, max_batch_tile):
    """Batch tile in rows.

    - If the whole batch fits under max_batch_tile, run a single grid step
      (tile == batch, always a legal block since it equals the array dim),
      unless splitting in two still leaves >= 512 rows per step (worth it for
      v7x's two TensorCores, negligible cost on v5e/v6e).
    - Otherwise use a large multiple-of-16 tile (bf16 packs 16 rows/sublane
      pair) and let Pallas handle the ragged last block.
    """
    if batch <= max_batch_tile:
        half = _round_up((batch + 1) // 2, 16)
        if half >= 512 and half < batch:
            return half
        return batch
    return _round_up(max_batch_tile, 16)


def mlp_forward(x, params, *, max_batch_tile=2048):
    """x: (B, input_dim) float32. params: w1..w4 (in,out) fp32, b1..b4 (1,out) fp32."""
    B, D = x.shape
    H1 = params["w1"].shape[1]
    H2 = params["w2"].shape[1]
    H3 = params["w3"].shape[1]
    out_dim = params["w4"].shape[1]

    tile = _choose_batch_tile(B, max_batch_tile)
    grid = (pl.cdiv(B, tile),)

    def rep(shape):
        # full-array block, constant index map -> loaded once, no re-DMA per step
        return pl.BlockSpec(shape, lambda i: (0, 0))

    return pl.pallas_call(
        mlp_kernel,
        out_shape=jax.ShapeDtypeStruct((B, out_dim), jnp.float32),
        grid=grid,
        in_specs=[
            pl.BlockSpec((tile, D), lambda i: (i, 0)),     # x tile (ragged edge OK)
            rep((D, H1)),  rep((1, H1)),                   # layer 1
            rep((H1, H2)), rep((1, H2)),                   # layer 2
            rep((H2, H3)), rep((1, H3)),                   # layer 3
            rep((H3, out_dim)), rep((1, out_dim)),         # layer 4
        ],
        out_specs=pl.BlockSpec((tile, out_dim), lambda i: (i, 0)),
        compiler_params=pltpu.CompilerParams(
            dimension_semantics=("parallel",),
            vmem_limit_bytes=32 << 20,   # footprint is single-digit MiB; never request all of v7x VMEM
        ),
    )(x,
      params["w1"], params["b1"],
      params["w2"], params["b2"],
      params["w3"], params["b3"],
      params["w4"], params["b4"])


def init_params(key, input_dim, output_dim):
    dims = [(input_dim, 64), (64, 32), (32, 16), (16, output_dim)]
    params = {}
    keys = jax.random.split(key, 2 * len(dims))
    for li, (fin, fout) in enumerate(dims, start=1):
        kw, kb = keys[2 * (li - 1)], keys[2 * (li - 1) + 1]
        bound = 1.0 / jnp.sqrt(fin)  # matches nn.Linear default init range
        params[f"w{li}"] = jax.random.uniform(kw, (fin, fout), jnp.float32, -bound, bound)
        params[f"b{li}"] = jax.random.uniform(kb, (1, fout), jnp.float32, -bound, bound)
    return params


def reference_forward(x, p):
    # Emulate the kernel's bf16 storage precision (fp32 accumulation) so the
    # comparison tolerance can stay tight.
    bf = lambda a: a.astype(jnp.bfloat16).astype(jnp.float32)
    h = jnp.maximum(bf(x) @ bf(p["w1"]) + p["b1"], 0.0)
    h = jnp.maximum(bf(h) @ bf(p["w2"]) + p["b2"], 0.0)
    h = jnp.maximum(bf(h) @ bf(p["w3"]) + p["b3"], 0.0)
    return bf(h) @ bf(p["w4"]) + p["b4"]


if __name__ == "__main__":
    # Otto dataset: 93 input features, 9 classes.
    input_dim, output_dim = 93, 9

    key = jax.random.PRNGKey(0)
    kx, kp, kx2 = jax.random.split(key, 3)
    params = init_params(kp, input_dim, output_dim)

    # Small, even batch: single 16-row tile, one grid step.
    batch = 16
    x = jax.random.normal(kx, (batch, input_dim), jnp.float32)
    out = jax.block_until_ready(mlp_forward(x, params))
    ref = reference_forward(x, params)
    assert out.shape == (batch, output_dim)
    assert jnp.allclose(out, ref, atol=2e-3, rtol=2e-3), float(jnp.max(jnp.abs(out - ref)))

    # Odd batch: tile == batch (block equals full array dim, no padding pass needed).
    batch2 = 21
    x2 = jax.random.normal(kx2, (batch2, input_dim), jnp.float32)
    out2 = jax.block_until_ready(mlp_forward(x2, params))
    ref2 = reference_forward(x2, params)
    assert out2.shape == (batch2, output_dim)
    assert jnp.allclose(out2, ref2, atol=2e-3, rtol=2e-3), float(jnp.max(jnp.abs(out2 - ref2)))

    print("KERNEL_OK")
</pallas_src>

<mosaic_0001>
module attributes {stable_mosaic.version = 11 : i64} {
  func.func @mlp_kernel(%arg0: i32, %arg1: memref<16x93xf32, #tpu.memory_space<vmem>>, %arg2: memref<93x64xf32, #tpu.memory_space<vmem>>, %arg3: memref<1x64xf32, #tpu.memory_space<vmem>>, %arg4: memref<64x32xf32, #tpu.memory_space<vmem>>, %arg5: memref<1x32xf32, #tpu.memory_space<vmem>>, %arg6: memref<32x16xf32, #tpu.memory_space<vmem>>, %arg7: memref<1x16xf32, #tpu.memory_space<vmem>>, %arg8: memref<16x9xf32, #tpu.memory_space<vmem>>, %arg9: memref<1x9xf32, #tpu.memory_space<vmem>>, %arg10: memref<16x9xf32, #tpu.memory_space<vmem>>) attributes {dimension_semantics = [#tpu.dimension_semantics<parallel>], iteration_bounds = array<i64: 1>, scalar_prefetch = 0 : i64, scratch_operands = 0 : i64, tpu.core_type = #tpu.core_type<tc>, window_params = [{transform_indices = @transform_0, window_bounds = array<i64: 16, 93>}, {pipeline_mode = #tpu.pipeline_mode<synchronous>, transform_indices = @transform_1, window_bounds = array<i64: 93, 64>}, {pipeline_mode = #tpu.pipeline_mode<synchronous>, transform_indices = @transform_2, window_bounds = array<i64: 1, 64>}, {pipeline_mode = #tpu.pipeline_mode<synchronous>, transform_indices = @transform_3, window_bounds = array<i64: 64, 32>}, {pipeline_mode = #tpu.pipeline_mode<synchronous>, transform_indices = @transform_4, window_bounds = array<i64: 1, 32>}, {pipeline_mode = #tpu.pipeline_mode<synchronous>, transform_indices = @transform_5, window_bounds = array<i64: 32, 16>}, {pipeline_mode = #tpu.pipeline_mode<synchronous>, transform_indices = @transform_6, window_bounds = array<i64: 1, 16>}, {pipeline_mode = #tpu.pipeline_mode<synchronous>, transform_indices = @transform_7, window_bounds = array<i64: 16, 9>}, {pipeline_mode = #tpu.pipeline_mode<synchronous>, transform_indices = @transform_8, window_bounds = array<i64: 1, 9>}, {transform_indices = @transform_9, window_bounds = array<i64: 16, 9>}]} {
    %c0 = arith.constant 0 : index
    %c0_0 = arith.constant 0 : index
    %0 = vector.load %arg1[%c0, %c0_0] : memref<16x93xf32, #tpu.memory_space<vmem>>, vector<16x93xf32>
    %1 = arith.truncf %0 : vector<16x93xf32> to vector<16x93xbf16>
    %c0_1 = arith.constant 0 : index
    %c0_2 = arith.constant 0 : index
    %2 = vector.load %arg2[%c0_1, %c0_2] : memref<93x64xf32, #tpu.memory_space<vmem>>, vector<93x64xf32>
    %3 = arith.truncf %2 : vector<93x64xf32> to vector<93x64xbf16>
    %cst = arith.constant dense<0.000000e+00> : vector<16x64xf32>
    %4 = tpu.matmul %1, %3, %cst {dimension_numbers = #tpu.dot_dimension_numbers<[1], [0], [0], [1], [0, 0, 1, 1], [], []>} : vector<16x93xbf16>, vector<93x64xbf16>, vector<16x64xf32> -> vector<16x64xf32>
    %c0_3 = arith.constant 0 : index
    %c0_4 = arith.constant 0 : index
    %5 = vector.load %arg3[%c0_3, %c0_4] : memref<1x64xf32, #tpu.memory_space<vmem>>, vector<1x64xf32>
    %6 = vector.broadcast %5 : vector<1x64xf32> to vector<16x64xf32>
    %7 = arith.addf %4, %6 : vector<16x64xf32>
    %cst_5 = arith.constant 0.000000e+00 : f32
    %8 = vector.broadcast %cst_5 : f32 to vector<16x64xf32>
    %9 = arith.maximumf %7, %8 : vector<16x64xf32>
    %10 = arith.truncf %9 : vector<16x64xf32> to vector<16x64xbf16>
    %c0_6 = arith.constant 0 : index
    %c0_7 = arith.constant 0 : index
    %11 = vector.load %arg4[%c0_6, %c0_7] : memref<64x32xf32, #tpu.memory_space<vmem>>, vector<64x32xf32>
    %12 = arith.truncf %11 : vector<64x32xf32> to vector<64x32xbf16>
    %cst_8 = arith.constant dense<0.000000e+00> : vector<16x32xf32>
    %13 = tpu.matmul %10, %12, %cst_8 {dimension_numbers = #tpu.dot_dimension_numbers<[1], [0], [0], [1], [0, 0, 1, 1], [], []>} : vector<16x64xbf16>, vector<64x32xbf16>, vector<16x32xf32> -> vector<16x32xf32>
    %c0_9 = arith.constant 0 : index
    %c0_10 = arith.constant 0 : index
    %14 = vector.load %arg5[%c0_9, %c0_10] : memref<1x32xf32, #tpu.memory_space<vmem>>, vector<1x32xf32>
    %15 = vector.broadcast %14 : vector<1x32xf32> to vector<16x32xf32>
    %16 = arith.addf %13, %15 : vector<16x32xf32>
    %cst_11 = arith.constant 0.000000e+00 : f32
    %17 = vector.broadcast %cst_11 : f32 to vector<16x32xf32>
    %18 = arith.maximumf %16, %17 : vector<16x32xf32>
    %19 = arith.truncf %18 : vector<16x32xf32> to vector<16x32xbf16>
    %c0_12 = arith.constant 0 : index
    %c0_13 = arith.constant 0 : index
    %20 = vector.load %arg6[%c0_12, %c0_13] : memref<32x16xf32, #tpu.memory_space<vmem>>, vector<32x16xf32>
    %21 = arith.truncf %20 : vector<32x16xf32> to vector<32x16xbf16>
    %cst_14 = arith.constant dense<0.000000e+00> : vector<16x16xf32>
    %22 = tpu.matmul %19, %21, %cst_14 {dimension_numbers = #tpu.dot_dimension_numbers<[1], [0], [0], [1], [0, 0, 1, 1], [], []>} : vector<16x32xbf16>, vector<32x16xbf16>, vector<16x16xf32> -> vector<16x16xf32>
    %c0_15 = arith.constant 0 : index
    %c0_16 = arith.constant 0 : index
    %23 = vector.load %arg7[%c0_15, %c0_16] : memref<1x16xf32, #tpu.memory_space<vmem>>, vector<1x16xf32>
    %24 = vector.broadcast %23 : vector<1x16xf32> to vector<16x16xf32>
    %25 = arith.addf %22, %24 : vector<16x16xf32>
    %cst_17 = arith.constant 0.000000e+00 : f32
    %26 = vector.broadcast %cst_17 : f32 to vector<16x16xf32>
    %27 = arith.maximumf %25, %26 : vector<16x16xf32>
    %28 = arith.truncf %27 : vector<16x16xf32> to vector<16x16xbf16>
    %c0_18 = arith.constant 0 : index
    %c0_19 = arith.constant 0 : index
    %29 = vector.load %arg8[%c0_18, %c0_19] : memref<16x9xf32, #tpu.memory_space<vmem>>, vector<16x9xf32>
    %30 = arith.truncf %29 : vector<16x9xf32> to vector<16x9xbf16>
    %cst_20 = arith.constant dense<0.000000e+00> : vector<16x9xf32>
    %31 = tpu.matmul %28, %30, %cst_20 {dimension_numbers = #tpu.dot_dimension_numbers<[1], [0], [0], [1], [0, 0, 1, 1], [], []>} : vector<16x16xbf16>, vector<16x9xbf16>, vector<16x9xf32> -> vector<16x9xf32>
    %c0_21 = arith.constant 0 : index
    %c0_22 = arith.constant 0 : index
    %32 = vector.load %arg9[%c0_21, %c0_22] : memref<1x9xf32, #tpu.memory_space<vmem>>, vector<1x9xf32>
    %33 = vector.broadcast %32 : vector<1x9xf32> to vector<16x9xf32>
    %34 = arith.addf %31, %33 : vector<16x9xf32>
    %c0_23 = arith.constant 0 : index
    %c0_24 = arith.constant 0 : index
    %35 = vector.load %arg10[%c0_23, %c0_24] : memref<16x9xf32, #tpu.memory_space<vmem>>, vector<16x9xf32>
    tpu.vector_store %arg10[%c0_23, %c0_24], %34 {strides = array<i32>} : memref<16x9xf32, #tpu.memory_space<vmem>>, vector<16x9xf32>,
    return
  }
  func.func @transform_0(%arg0: i32) -> (i32, i32) {
    %c0_i32 = arith.constant 0 : i32
    %c0_i32_0 = arith.constant 0 : i32
    return %arg0, %c0_i32 : i32, i32
  }
  func.func @transform_1(%arg0: i32) -> (i32, i32) {
    %c0_i32 = arith.constant 0 : i32
    %c0_i32_0 = arith.constant 0 : i32
    %c0_i32_1 = arith.constant 0 : i32
    return %c0_i32, %c0_i32_0 : i32, i32
  }
  func.func @transform_2(%arg0: i32) -> (i32, i32) {
    %c0_i32 = arith.constant 0 : i32
    %c0_i32_0 = arith.constant 0 : i32
    %c0_i32_1 = arith.constant 0 : i32
    return %c0_i32, %c0_i32_0 : i32, i32
  }
  func.func @transform_3(%arg0: i32) -> (i32, i32) {
    %c0_i32 = arith.constant 0 : i32
    %c0_i32_0 = arith.constant 0 : i32
    %c0_i32_1 = arith.constant 0 : i32
    return %c0_i32, %c0_i32_0 : i32, i32
  }
  func.func @transform_4(%arg0: i32) -> (i32, i32) {
    %c0_i32 = arith.constant 0 : i32
    %c0_i32_0 = arith.constant 0 : i32
    %c0_i32_1 = arith.constant 0 : i32
    return %c0_i32, %c0_i32_0 : i32, i32
  }
  func.func @transform_5(%arg0: i32) -> (i32, i32) {
    %c0_i32 = arith.constant 0 : i32
    %c0_i32_0 = arith.constant 0 : i32
    %c0_i32_1 = arith.constant 0 : i32
    return %c0_i32, %c0_i32_0 : i32, i32
  }
  func.func @transform_6(%arg0: i32) -> (i32, i32) {
    %c0_i32 = arith.constant 0 : i32
    %c0_i32_0 = arith.constant 0 : i32
    %c0_i32_1 = arith.constant 0 : i32
    return %c0_i32, %c0_i32_0 : i32, i32
  }
  func.func @transform_7(%arg0: i32) -> (i32, i32) {
    %c0_i32 = arith.constant 0 : i32
    %c0_i32_0 = arith.constant 0 : i32
    %c0_i32_1 = arith.constant 0 : i32
    return %c0_i32, %c0_i32_0 : i32, i32
  }
  func.func @transform_8(%arg0: i32) -> (i32, i32) {
    %c0_i32 = arith.constant 0 : i32
    %c0_i32_0 = arith.constant 0 : i32
    %c0_i32_1 = arith.constant 0 : i32
    return %c0_i32, %c0_i32_0 : i32, i32
  }
  func.func @transform_9(%arg0: i32) -> (i32, i32) {
    %c0_i32 = arith.constant 0 : i32
    %c0_i32_0 = arith.constant 0 : i32
    return %arg0, %c0_i32 : i32, i32
  }
}

</mosaic_0001>

<llo_original>
// kernel: tpu_custom_call.1
$region0: #{tpu_custom_call.1}
  #allocation0 [shape = 'u32[]', space=smem, size = 0x4, offset = 0x4, fixed_abs, tag = 'smem constant byte address 0x4 - core index']
  #allocation1 [shape = 'u32[144,128]{1,0:T(1,128)}', space=vmem, size = 0x12000, scoped, tag = 'internal scratch']
  %s0 = inlined_call_operand.vmem [shape: f32[16,93], index: 0, kind: input, shape index: {}]
  %s1 = inlined_call_operand.vmem [shape: f32[93,64], index: 1, kind: input, shape index: {}]
  %s2 = inlined_call_operand.vmem [shape: f32[1,64], index: 2, kind: input, shape index: {}]
  %s3 = inlined_call_operand.vmem [shape: f32[64,32], index: 3, kind: input, shape index: {}]
  %s4 = inlined_call_operand.vmem [shape: f32[1,32], index: 4, kind: input, shape index: {}]
  %s5 = inlined_call_operand.vmem [shape: f32[32,16], index: 5, kind: input, shape index: {}]
  %s6 = inlined_call_operand.vmem [shape: f32[1,16], index: 6, kind: input, shape index: {}]
  %s7 = inlined_call_operand.vmem [shape: f32[16,9], index: 7, kind: input, shape index: {}]
  %s8 = inlined_call_operand.vmem [shape: f32[1,9], index: 8, kind: input, shape index: {}]
  %s9 = inlined_call_operand.hbm [shape: f32[16,9], index: 9, kind: output, shape index: {}]
  %s10 = sld [smem:[#allocation0]]
  $region46: #{tpu_custom_call.1} parent=0
    _
  %s12 = ssub.s32 1, %s10
  %s13 = scalar_select 0, %s12, %s10
  $region1: #{tpu_custom_call.1} parent=0
    #allocation2 [shape = 'u8[8192]{0}', space=vmem, size = 0x2000, scoped, tag = 'output window, operand 0, single buffered']
    #allocation3 [shape = 's32[1]{0}', space=sflag, size = 0x4, scoped, tag = 'scoped memory for tpu_custom_call.1']
    %14 = vsyncpa [#allocation3], 0
    // Predicated region
    $region2: #{tpu_custom_call.1} parent=1 // pred_check
      _
    $region3: #{tpu_custom_call.1} parent=1 // pred_check_branch
      %16 = sbr.rel (0) target = $region5
    $region4: #{tpu_custom_call.1} parent=1 // pred_region
      _
    $region5: #{tpu_custom_call.1} parent=1 // pred_fallthru
      _
    // Predicated region
    $region6: #{tpu_custom_call.1} parent=1 // pred_check
      _
    $region7: #{tpu_custom_call.1} parent=1 // pred_check_branch
      %18 = sbr.rel (0) target = $region9
    $region8: #{tpu_custom_call.1} parent=1 // pred_region
      _
    $region9: #{tpu_custom_call.1} parent=1 // pred_fallthru
      _
    // Predicated region
    $region10: #{tpu_custom_call.1} parent=1 // pred_check
      _
    $region11: #{tpu_custom_call.1} parent=1 // pred_check_branch
      %20 = sbr.rel (0) target = $region13
    $region12: #{tpu_custom_call.1} parent=1 // pred_region
      _
    $region13: #{tpu_custom_call.1} parent=1 // pred_fallthru
      _
    // Predicated region
    $region14: #{tpu_custom_call.1} parent=1 // pred_check
      _
    $region15: #{tpu_custom_call.1} parent=1 // pred_check_branch
      %22 = sbr.rel (0) target = $region17
    $region16: #{tpu_custom_call.1} parent=1 // pred_region
      _
    $region17: #{tpu_custom_call.1} parent=1 // pred_fallthru
      _
    // Predicated region
    $region18: #{tpu_custom_call.1} parent=1 // pred_check
      _
    $region19: #{tpu_custom_call.1} parent=1 // pred_check_branch
      %24 = sbr.rel (0) target = $region21
    $region20: #{tpu_custom_call.1} parent=1 // pred_region
      _
    $region21: #{tpu_custom_call.1} parent=1 // pred_fallthru
      _
    // Predicated region
    $region22: #{tpu_custom_call.1} parent=1 // pred_check
      _
    $region23: #{tpu_custom_call.1} parent=1 // pred_check_branch
      %26 = sbr.rel (0) target = $region25
    $region24: #{tpu_custom_call.1} parent=1 // pred_region
      _
    $region25: #{tpu_custom_call.1} parent=1 // pred_fallthru
      _
    // Predicated region
    $region26: #{tpu_custom_call.1} parent=1 // pred_check
      _
    $region27: #{tpu_custom_call.1} parent=1 // pred_check_branch
      %28 = sbr.rel (0) target = $region29
    $region28: #{tpu_custom_call.1} parent=1 // pred_region
      _
    $region29: #{tpu_custom_call.1} parent=1 // pred_fallthru
      _
    // Predicated region
    $region30: #{tpu_custom_call.1} parent=1 // pred_check
      _
    $region31: #{tpu_custom_call.1} parent=1 // pred_check_branch
      %30 = sbr.rel (0) target = $region33
    $region32: #{tpu_custom_call.1} parent=1 // pred_region
      _
    $region33: #{tpu_custom_call.1} parent=1 // pred_fallthru
      _
    // Predicated region
    $region34: #{tpu_custom_call.1} parent=1 // pred_check
      _
    $region35: #{tpu_custom_call.1} parent=1 // pred_check_branch
      %32 = sbr.rel (0) target = $region37
    $region36: #{tpu_custom_call.1} parent=1 // pred_region
      _
    $region37: #{tpu_custom_call.1} parent=1 // pred_fallthru
      _
    %v34 = vld [vmem:[%s0] sm:$0xff]
    %v35 = vld [vmem:[%s0 + $0x8] sm:$0xff]
    %v36 = vpack.c.bf16 %v35, %v34
    %v37 = vld [vmem:[%s1] sm:$0xff]
    %v38 = vld [vmem:[%s1 + $0x8] sm:$0xff]
    %v39 = vld [vmem:[%s1 + $0x10] sm:$0xff]
    %v40 = vld [vmem:[%s1 + $0x18] sm:$0xff]
    %v41 = vld [vmem:[%s1 + $0x20] sm:$0xff]
    %v42 = vld [vmem:[%s1 + $0x28] sm:$0xff]
    %v43 = vld [vmem:[%s1 + $0x30] sm:$0xff]
    %v44 = vld [vmem:[%s1 + $0x38] sm:$0xff]
    %v45 = vld [vmem:[%s1 + $0x40] sm:$0xff]
    %v46 = vld [vmem:[%s1 + $0x48] sm:$0xff]
    %v47 = vld [vmem:[%s1 + $0x50] sm:$0xff]
    %v48 = vld [vmem:[%s1 + $0x58] sm:$0x1f]
    %v49 = vpack.c.bf16 %v38, %v37
    %v50 = vpack.c.bf16 %v40, %v39
    %v51 = vpack.c.bf16 %v42, %v41
    %v52 = vpack.c.bf16 %v44, %v43
    %v53 = vpack.c.bf16 %v46, %v45
    %v54 = vpack.c.bf16 %v48, %v47
    %v55 = vld [vmem:[%s2] sm:$0x1]
    %v57 = vlaneseq
    %v58 = vshrl.u32 %v57, 7
    %v59 = vsub.s32 0, %v58
    %v60 = vrot.slane %v55, %v59
    %vm62 = vcmask 760832
    %v64 = vsel %vm62, %v36, 0
    %vm66 = vcmask 1045504
    %vm67 = vcmask 1046528
    %v68 = vsel %vm66, 4294967295, 65535
    %v69 = vsel %vm67, %v68, 0
    %v71 = vand.u32 %v54, %v69
    %73 = vmatprep.subr.bf16.mxu0 0
    %74 = vmatpush1.bf16.msra.mxu0 %v49
    %75 = vmatprep.subr.bf16.mxu0 0
    %76 = vmatpush1.bf16.msra.mxu0 %v50
    %77 = vmatprep.subr.bf16.mxu0 0
    %78 = vmatpush1.bf16.msra.mxu0 %v51
    %79 = vmatprep.subr.bf16.mxu0 0
    %80 = vmatpush1.bf16.msra.mxu0 %v52
    %81 = vmatprep.subr.bf16.mxu0 0
    %82 = vmatpush1.bf16.msra.mxu0 %v53
    %83 = vmatprep.subr.bf16.mxu0 0
    %84 = vmatpush1.bf16.msra.mxu0 %v71
    %85 = vmatprep.subr.bf16.mxu0 0
    %86 = vmatpush1.bf16.msra.mxu0 0
    %87 = vmatprep.subr.bf16.mxu0 0
    %88 = vmatpush1.bf16.msra.mxu0 0
    %89 = vmatprep.subr.bf16.mxu0 0
    %90 = vmatpush1.bf16.msra.mxu0 0
    %91 = vmatprep.subr.bf16.mxu0 0
    %92 = vmatpush1.bf16.msra.mxu0 0
    %93 = vmatprep.subr.bf16.mxu0 0
    %94 = vmatpush1.bf16.msra.mxu0 0
    %95 = vmatprep.subr.bf16.mxu0 0
    %96 = vmatpush1.bf16.msra.mxu0 0
    %97 = vmatprep.subr.bf16.mxu0 0
    %98 = vmatpush1.bf16.msra.mxu0 0
    %99 = vmatprep.subr.bf16.mxu0 0
    %100 = vmatpush1.bf16.msra.mxu0 0
    %101 = vmatprep.subr.bf16.mxu0 0
    %102 = vmatpush1.bf16.msra.mxu0 0
    %103 = vmatprep.subr.bf16.mxu0 0
    %104 = vmatpush1.bf16.msra.mxu0 0
    %105 = vmatprep.mubr.bf16.mxu0 0
    %106 = vmatmul.mubr.bf16.gmra.mrb[0].mxu0 %v64
    %v107 = vpop.f32.mrb[0].mxu0
    %v108 = vadd.f32 %v60, %v107
    %v109 = vpop.f32.mrb[0].mxu0
    %v110 = vpop.f32.mrb[0].mxu0
    %v111 = vadd.f32 %v60, %v110
    %v112 = vpop.f32.mrb[0].mxu0
    %113 = vdwg.mxu0
    %v114 = vmax.f32 %v108, 0.0
    %v115 = vmax.f32 %v111, 0.0
    %v116 = vpack.c.bf16 %v115, %v114
    %v117 = vld [vmem:[%s3] sm:$0xff]
    %v118 = vld [vmem:[%s3 + $0x8] sm:$0xff]
    %v119 = vld [vmem:[%s3 + $0x10] sm:$0xff]
    %v120 = vld [vmem:[%s3 + $0x18] sm:$0xff]
    %v121 = vld [vmem:[%s3 + $0x20] sm:$0xff]
    %v122 = vld [vmem:[%s3 + $0x28] sm:$0xff]
    %v123 = vld [vmem:[%s3 + $0x30] sm:$0xff]
    %v124 = vld [vmem:[%s3 + $0x38] sm:$0xff]
    %v125 = vpack.c.bf16 %v118, %v117
    %v126 = vpack.c.bf16 %v120, %v119
    %v127 = vpack.c.bf16 %v122, %v121
    %v128 = vpack.c.bf16 %v124, %v123
    %v129 = vld [vmem:[%s4] sm:$0x1]
    %v131 = vlaneseq
    %v132 = vshrl.u32 %v131, 7
    %v133 = vsub.s32 0, %v132
    %v134 = vrot.slane %v129, %v133
    %vm136 = vcmask 523264
    %v138 = vsel %vm136, %v116, 0
    %140 = vmatprep.subr.bf16.mxu0 0
    %141 = vmatpush1.bf16.msra.mxu0 %v125
    %142 = vmatprep.subr.bf16.mxu0 0
    %143 = vmatpush1.bf16.msra.mxu0 %v126
    %144 = vmatprep.subr.bf16.mxu0 0
    %145 = vmatpush1.bf16.msra.mxu0 %v127
    %146 = vmatprep.subr.bf16.mxu0 0
    %147 = vmatpush1.bf16.msra.mxu0 %v128
    %148 = vmatprep.subr.bf16.mxu0 0
    %149 = vmatpush1.bf16.msra.mxu0 0
    %150 = vmatprep.subr.bf16.mxu0 0
    %151 = vmatpush1.bf16.msra.mxu0 0
    %152 = vmatprep.subr.bf16.mxu0 0
    %153 = vmatpush1.bf16.msra.mxu0 0
    %154 = vmatprep.subr.bf16.mxu0 0
    %155 = vmatpush1.bf16.msra.mxu0 0
    %156 = vmatprep.subr.bf16.mxu0 0
    %157 = vmatpush1.bf16.msra.mxu0 0
    %158 = vmatprep.subr.bf16.mxu0 0
    %159 = vmatpush1.bf16.msra.mxu0 0
    %160 = vmatprep.subr.bf16.mxu0 0
    %161 = vmatpush1.bf16.msra.mxu0 0
    %162 = vmatprep.subr.bf16.mxu0 0
    %163 = vmatpush1.bf16.msra.mxu0 0
    %164 = vmatprep.subr.bf16.mxu0 0
    %165 = vmatpush1.bf16.msra.mxu0 0
    %166 = vmatprep.subr.bf16.mxu0 0
    %167 = vmatpush1.bf16.msra.mxu0 0
    %168 = vmatprep.subr.bf16.mxu0 0
    %169 = vmatpush1.bf16.msra.mxu0 0
    %170 = vmatprep.subr.bf16.mxu0 0
    %171 = vmatpush1.bf16.msra.mxu0 0
    %172 = vmatprep.mubr.bf16.mxu0 0
    %173 = vmatmul.mubr.bf16.gmra.mrb[0].mxu0 %v138
    %v174 = vpop.f32.mrb[0].mxu0
    %v175 = vadd.f32 %v134, %v174
    %v176 = vpop.f32.mrb[0].mxu0
    %v177 = vpop.f32.mrb[0].mxu0
    %v178 = vadd.f32 %v134, %v177
    %v179 = vpop.f32.mrb[0].mxu0
    %180 = vdwg.mxu0
    %v181 = vmax.f32 %v175, 0.0
    %v182 = vmax.f32 %v178, 0.0
    %v183 = vpack.c.bf16 %v182, %v181
    %v184 = vld [vmem:[%s5] sm:$0xff]
    %v185 = vld [vmem:[%s5 + $0x8] sm:$0xff]
    %v186 = vld [vmem:[%s5 + $0x10] sm:$0xff]
    %v187 = vld [vmem:[%s5 + $0x18] sm:$0xff]
    %v188 = vpack.c.bf16 %v185, %v184
    %v189 = vpack.c.bf16 %v187, %v186
    %v190 = vld [vmem:[%s6] sm:$0x1]
    %v192 = vlaneseq
    %v193 = vshrl.u32 %v192, 7
    %v194 = vsub.s32 0, %v193
    %v195 = vrot.slane %v190, %v194
    %vm197 = vcmask 261120
    %v199 = vsel %vm197, %v183, 0
    %201 = vmatprep.subr.bf16.mxu0 0
    %202 = vmatpush1.bf16.msra.mxu0 %v188
    %203 = vmatprep.subr.bf16.mxu0 0
    %204 = vmatpush1.bf16.msra.mxu0 %v189
    %205 = vmatprep.subr.bf16.mxu0 0
    %206 = vmatpush1.bf16.msra.mxu0 0
    %207 = vmatprep.subr.bf16.mxu0 0
    %208 = vmatpush1.bf16.msra.mxu0 0
    %209 = vmatprep.subr.bf16.mxu0 0
    %210 = vmatpush1.bf16.msra.mxu0 0
    %211 = vmatprep.subr.bf16.mxu0 0
    %212 = vmatpush1.bf16.msra.mxu0 0
    %213 = vmatprep.subr.bf16.mxu0 0
    %214 = vmatpush1.bf16.msra.mxu0 0
    %215 = vmatprep.subr.bf16.mxu0 0
    %216 = vmatpush1.bf16.msra.mxu0 0
    %217 = vmatprep.subr.bf16.mxu0 0
    %218 = vmatpush1.bf16.msra.mxu0 0
    %219 = vmatprep.subr.bf16.mxu0 0
    %220 = vmatpush1.bf16.msra.mxu0 0
    %221 = vmatprep.subr.bf16.mxu0 0
    %222 = vmatpush1.bf16.msra.mxu0 0
    %223 = vmatprep.subr.bf16.mxu0 0
    %224 = vmatpush1.bf16.msra.mxu0 0
    %225 = vmatprep.subr.bf16.mxu0 0
    %226 = vmatpush1.bf16.msra.mxu0 0
    %227 = vmatprep.subr.bf16.mxu0 0
    %228 = vmatpush1.bf16.msra.mxu0 0
    %229 = vmatprep.subr.bf16.mxu0 0
    %230 = vmatpush1.bf16.msra.mxu0 0
    %231 = vmatprep.subr.bf16.mxu0 0
    %232 = vmatpush1.bf16.msra.mxu0 0
    %233 = vmatprep.mubr.bf16.mxu0 0
    %234 = vmatmul.mubr.bf16.gmra.mrb[0].mxu0 %v199
    %v235 = vpop.f32.mrb[0].mxu0
    %v236 = vadd.f32 %v195, %v235
    %v237 = vpop.f32.mrb[0].mxu0
    %v238 = vpop.f32.mrb[0].mxu0
    %v239 = vadd.f32 %v195, %v238
    %v240 = vpop.f32.mrb[0].mxu0
    %241 = vdwg.mxu0
    %v242 = vmax.f32 %v236, 0.0
    %v243 = vmax.f32 %v239, 0.0
    %v244 = vpack.c.bf16 %v243, %v242
    %v245 = vld [vmem:[%s7] sm:$0xff]
    %v246 = vld [vmem:[%s7 + $0x8] sm:$0xff]
    %v247 = vpack.c.bf16 %v246, %v245
    %v248 = vld [vmem:[%s8] sm:$0x1]
    %v250 = vlaneseq
    %v251 = vshrl.u32 %v250, 7
    %v252 = vsub.s32 0, %v251
    %v253 = vrot.slane %v248, %v252
    %vm255 = vcmask 130048
    %v257 = vsel %vm255, %v244, 0
    %259 = vmatprep.subr.bf16.mxu0 0
    %260 = vmatpush1.bf16.msra.mxu0 %v247
    %261 = vmatprep.subr.bf16.mxu0 0
    %262 = vmatpush1.bf16.msra.mxu0 0
    %263 = vmatprep.subr.bf16.mxu0 0
    %264 = vmatpush1.bf16.msra.mxu0 0
    %265 = vmatprep.subr.bf16.mxu0 0
    %266 = vmatpush1.bf16.msra.mxu0 0
    %267 = vmatprep.subr.bf16.mxu0 0
    %268 = vmatpush1.bf16.msra.mxu0 0
    %269 = vmatprep.subr.bf16.mxu0 0
    %270 = vmatpush1.bf16.msra.mxu0 0
    %271 = vmatprep.subr.bf16.mxu0 0
    %272 = vmatpush1.bf16.msra.mxu0 0
    %273 = vmatprep.subr.bf16.mxu0 0
    %274 = vmatpush1.bf16.msra.mxu0 0
    %275 = vmatprep.subr.bf16.mxu0 0
    %276 = vmatpush1.bf16.msra.mxu0 0
    %277 = vmatprep.subr.bf16.mxu0 0
    %278 = vmatpush1.bf16.msra.mxu0 0
    %279 = vmatprep.subr.bf16.mxu0 0
    %280 = vmatpush1.bf16.msra.mxu0 0
    %281 = vmatprep.subr.bf16.mxu0 0
    %282 = vmatpush1.bf16.msra.mxu0 0
    %283 = vmatprep.subr.bf16.mxu0 0
    %284 = vmatpush1.bf16.msra.mxu0 0
    %285 = vmatprep.subr.bf16.mxu0 0
    %286 = vmatpush1.bf16.msra.mxu0 0
    %287 = vmatprep.subr.bf16.mxu0 0
    %288 = vmatpush1.bf16.msra.mxu0 0
    %289 = vmatprep.subr.bf16.mxu0 0
    %290 = vmatpush1.bf16.msra.mxu0 0
    %291 = vmatprep.mubr.bf16.mxu0 0
    %292 = vmatmul.mubr.bf16.gmra.mrb[0].mxu0 %v257
    %v293 = vpop.f32.mrb[0].mxu0
    %v294 = vadd.f32 %v253, %v293
    %v295 = vpop.f32.mrb[0].mxu0
    %v296 = vpop.f32.mrb[0].mxu0
    %v297 = vadd.f32 %v253, %v296
    %v298 = vpop.f32.mrb[0].mxu0
    %299 = vdwg.mxu0
    %vm300 = vcmask 72704
    %301 = vst.msk [vmem:[#allocation2] sm:$0xff] %vm300, %v294
    %302 = vst.msk [vmem:[#allocation2 + $0x8] sm:$0xff] %vm300, %v297
    // Predicated region
    $region38: #{tpu_custom_call.1} parent=1 // pred_check
      _
    $region39: #{tpu_custom_call.1} parent=1 // pred_check_branch
      %304 = sbr.rel (0) target = $region41
    $region40: #{tpu_custom_call.1} parent=1 // pred_region
      %s306 = ssub.s32 256, 256
      %307 = vsyncadd [#allocation3], %s306
      %s308 = sshll.u32 [#allocation2], 4
      %s309 = int_to_ptr.vmem [resolvable:$true] %s308
      %314 = dma.vmem_to_hbm [thread:$0]  %s309, 256, %s9, [#allocation3], 128, 128, 8
    $region41: #{tpu_custom_call.1} parent=1 // pred_fallthru
      _
    // Predicated region
    $region42: #{tpu_custom_call.1} parent=1 // pred_check
      _
    $region43: #{tpu_custom_call.1} parent=1 // pred_check_branch
      %316 = sbr.rel (0) target = $region45
    $region44: #{tpu_custom_call.1} parent=1 // pred_region
      %317 = dma.done [#allocation3], 256
    $region45: #{tpu_custom_call.1} parent=1 // pred_fallthru
      _
    %318 = vsyncpa [#allocation3], 1

</llo_original>
